<compile_context>
chip_gen: v5e
topology: v5e:2x2
jax: 0.10.0
libtpu: 0.0.40
codegen_flags: <defaults>
</compile_context>

<pallas_src>
import jax
import jax.numpy as jnp
from jax.experimental import pallas as pl
from jax.experimental.pallas import tpu as pltpu


def _round_up(n, m):
    return ((n + m - 1) // m) * m


def _encoder_kernel(x_ref,
                    w1_ref, g1_ref, be1_ref,
                    w2_ref, g2_ref, be2_ref,
                    wh_ref, bh_ref,
                    out_ref):
    eps = 1e-5
    inv_b = 1.0 / x_ref.shape[0]  # static python float

    # ---- fc1 (bias dropped: cancelled by BN) + folded BatchNorm + ReLU ----
    h1 = jnp.dot(x_ref[...], w1_ref[...], preferred_element_type=jnp.float32)
    s1 = jnp.sum(h1, axis=0, keepdims=True)
    ss1 = jnp.sum(h1 * h1, axis=0, keepdims=True)
    m1 = s1 * inv_b
    v1 = ss1 * inv_b - m1 * m1                       # biased variance
    scale1 = g1_ref[...] * jax.lax.rsqrt(v1 + eps)
    shift1 = be1_ref[...] - m1 * scale1
    a1 = jnp.maximum(h1 * scale1 + shift1, 0.0).astype(jnp.bfloat16)

    # ---- fc2 (bias dropped) + folded BatchNorm + ReLU ----
    h2 = jnp.dot(a1, w2_ref[...], preferred_element_type=jnp.float32)
    s2 = jnp.sum(h2, axis=0, keepdims=True)
    ss2 = jnp.sum(h2 * h2, axis=0, keepdims=True)
    m2 = s2 * inv_b
    v2 = ss2 * inv_b - m2 * m2
    scale2 = g2_ref[...] * jax.lax.rsqrt(v2 + eps)
    shift2 = be2_ref[...] - m2 * scale2
    a2 = jnp.maximum(h2 * scale2 + shift2, 0.0).astype(jnp.bfloat16)

    # ---- fused heads: one lane-dense matmul, single [B, 128*k] store ----
    out_ref[...] = (jnp.dot(a2, wh_ref[...], preferred_element_type=jnp.float32)
                    + bh_ref[...])


def prepare_params(params, input_dim, hidden_dim, latent_dim):
    """One-time re-layout: transpose to [in, out], zero-pad to 128-multiples,
    fuse the mu/logvar heads, cast MXU operands to bf16."""
    h1 = hidden_dim * 2
    h2 = hidden_dim
    din_p = _round_up(input_dim, 128)
    h1_p = _round_up(h1, 128)
    h2_p = _round_up(h2, 128)
    lout_p = _round_up(2 * latent_dim, 128)

    def pad_wT(w_torch_layout, in_p, out_p):
        wt = jnp.asarray(w_torch_layout, jnp.float32).T  # [in, out]
        wt = jnp.pad(wt, ((0, in_p - wt.shape[0]), (0, out_p - wt.shape[1])))
        return wt.astype(jnp.bfloat16)

    def pad_row(v, out_p, fill=0.0):
        r = jnp.asarray(v, jnp.float32).reshape(1, -1)
        return jnp.pad(r, ((0, 0), (0, out_p - r.shape[1])),
                       constant_values=fill)

    # fused heads: columns [0:L) = mu, [L:2L) = logvar, rest zero-padding
    w_heads = jnp.concatenate(
        [jnp.asarray(params["w_mu"], jnp.float32).T,
         jnp.asarray(params["w_lv"], jnp.float32).T], axis=1)   # [h2, 2L]
    b_heads = jnp.concatenate(
        [jnp.asarray(params["b_mu"], jnp.float32),
         jnp.asarray(params["b_lv"], jnp.float32)], axis=0)     # [2L]

    prep = {
        "w1": pad_wT(params["w1"], din_p, h1_p),
        "g1": pad_row(params["g1"], h1_p, fill=1.0),
        "be1": pad_row(params["beta1"], h1_p),
        "w2": pad_wT(params["w2"], h1_p, h2_p),
        "g2": pad_row(params["g2"], h2_p, fill=1.0),
        "be2": pad_row(params["beta2"], h2_p),
        "w_heads": jnp.pad(w_heads, ((0, h2_p - w_heads.shape[0]),
                                     (0, lout_p - w_heads.shape[1]))
                           ).astype(jnp.bfloat16),
        "b_heads": pad_row(b_heads, lout_p),
        "dims": (din_p, h1_p, h2_p, lout_p),
        "latent_dim": latent_dim,
    }
    return prep


def encoder_forward(x, prep):
    """x: [B, input_dim] float32. prep: output of prepare_params()."""
    B, d_in = x.shape
    din_p, h1_p, h2_p, lout_p = prep["dims"]
    latent_dim = prep["latent_dim"]

    x_p = jnp.pad(jnp.asarray(x, jnp.float32),
                  ((0, 0), (0, din_p - d_in))).astype(jnp.bfloat16)

    vmem = pl.BlockSpec(memory_space=pltpu.MemorySpace.VMEM)
    out = pl.pallas_call(
        _encoder_kernel,
        out_shape=jax.ShapeDtypeStruct((B, lout_p), jnp.float32),
        in_specs=[vmem] * 9,
        out_specs=vmem,
        compiler_params=pltpu.CompilerParams(
            vmem_limit_bytes=32 * 1024 * 1024),
    )(x_p,
      prep["w1"], prep["g1"], prep["be1"],
      prep["w2"], prep["g2"], prep["be2"],
      prep["w_heads"], prep["b_heads"])

    mu = out[:, :latent_dim]
    logvar = out[:, latent_dim:2 * latent_dim]
    return mu, logvar


def init_params(key, input_dim, hidden_dim, latent_dim):
    """Deterministic synthetic parameters (PyTorch shape conventions)."""
    ks = jax.random.split(key, 8)
    h2 = hidden_dim * 2
    s = 0.05
    return {
        "w1": jax.random.normal(ks[0], (h2, input_dim), jnp.float32) * s,
        "b1": jax.random.normal(ks[1], (h2,), jnp.float32) * s,
        "g1": jnp.ones((h2,), jnp.float32),
        "beta1": jnp.zeros((h2,), jnp.float32),
        "w2": jax.random.normal(ks[2], (hidden_dim, h2), jnp.float32) * s,
        "b2": jax.random.normal(ks[3], (hidden_dim,), jnp.float32) * s,
        "g2": jnp.ones((hidden_dim,), jnp.float32),
        "beta2": jnp.zeros((hidden_dim,), jnp.float32),
        "w_mu": jax.random.normal(ks[4], (latent_dim, hidden_dim), jnp.float32) * s,
        "b_mu": jax.random.normal(ks[5], (latent_dim,), jnp.float32) * s,
        "w_lv": jax.random.normal(ks[6], (latent_dim, hidden_dim), jnp.float32) * s,
        "b_lv": jax.random.normal(ks[7], (latent_dim,), jnp.float32) * s,
    }


def encoder_reference(x, params):
    """Pure-JAX reference with the original op order (biases, two-pass BN
    stats, separate heads) but the same bf16 matmul operands as the kernel."""
    eps = 1e-5

    def lin(h, w, b):
        return (jnp.dot(h.astype(jnp.bfloat16),
                        jnp.asarray(w, jnp.float32).T.astype(jnp.bfloat16),
                        preferred_element_type=jnp.float32)
                + jnp.asarray(b, jnp.float32))

    def bn_relu(h, g, be):
        m = jnp.mean(h, axis=0, keepdims=True)
        v = jnp.mean((h - m) ** 2, axis=0, keepdims=True)
        h = (h - m) * jax.lax.rsqrt(v + eps) * g + be
        return jnp.maximum(h, 0.0)

    h = bn_relu(lin(x, params["w1"], params["b1"]), params["g1"], params["beta1"])
    h = bn_relu(lin(h, params["w2"], params["b2"]), params["g2"], params["beta2"])
    mu = lin(h, params["w_mu"], params["b_mu"])
    logvar = lin(h, params["w_lv"], params["b_lv"])
    return mu, logvar


if __name__ == "__main__":
    # B multiple of 16 keeps bf16 sublanes dense; feature dims are padded to 128.
    B, input_dim, hidden_dim, latent_dim = 16, 32, 32, 16

    key = jax.random.PRNGKey(0)
    k_params, k_x = jax.random.split(key)
    params = init_params(k_params, input_dim, hidden_dim, latent_dim)
    x = jax.random.normal(k_x, (B, input_dim), jnp.float32)

    prep = prepare_params(params, input_dim, hidden_dim, latent_dim)

    mu, logvar = encoder_forward(x, prep)
    jax.block_until_ready((mu, logvar))

    assert mu.shape == (B, latent_dim) and logvar.shape == (B, latent_dim)
    assert bool(jnp.all(jnp.isfinite(mu))) and bool(jnp.all(jnp.isfinite(logvar)))

    # sanity check against a pure-JAX reference of the original module semantics
    mu_ref, lv_ref = encoder_reference(x, params)
    assert bool(jnp.allclose(mu, mu_ref, atol=5e-2, rtol=5e-2))
    assert bool(jnp.allclose(logvar, lv_ref, atol=5e-2, rtol=5e-2))

    print("KERNEL_OK")
</pallas_src>

<mosaic_0001>
module attributes {stable_mosaic.version = 11 : i64} {
  func.func @_encoder_kernel(%arg0: memref<16x128xbf16, #tpu.memory_space<vmem>>, %arg1: memref<128x128xbf16, #tpu.memory_space<vmem>>, %arg2: memref<1x128xf32, #tpu.memory_space<vmem>>, %arg3: memref<1x128xf32, #tpu.memory_space<vmem>>, %arg4: memref<128x128xbf16, #tpu.memory_space<vmem>>, %arg5: memref<1x128xf32, #tpu.memory_space<vmem>>, %arg6: memref<1x128xf32, #tpu.memory_space<vmem>>, %arg7: memref<128x128xbf16, #tpu.memory_space<vmem>>, %arg8: memref<1x128xf32, #tpu.memory_space<vmem>>, %arg9: memref<16x128xf32, #tpu.memory_space<vmem>>) attributes {dimension_semantics = [], scalar_prefetch = 0 : i64, scratch_operands = 0 : i64, tpu.core_type = #tpu.core_type<tc>} {
    %c0 = arith.constant 0 : index
    %c0_0 = arith.constant 0 : index
    %0 = vector.load %arg0[%c0, %c0_0] : memref<16x128xbf16, #tpu.memory_space<vmem>>, vector<16x128xbf16>
    %c0_1 = arith.constant 0 : index
    %c0_2 = arith.constant 0 : index
    %1 = vector.load %arg1[%c0_1, %c0_2] : memref<128x128xbf16, #tpu.memory_space<vmem>>, vector<128x128xbf16>
    %cst = arith.constant dense<0.000000e+00> : vector<16x128xf32>
    %2 = tpu.matmul %0, %1, %cst {dimension_numbers = #tpu.dot_dimension_numbers<[1], [0], [0], [1], [0, 0, 1, 1], [], []>} : vector<16x128xbf16>, vector<128x128xbf16>, vector<16x128xf32> -> vector<16x128xf32>
    %cst_3 = arith.constant dense<0.000000e+00> : vector<128xf32>
    %3 = vector.multi_reduction <add>, %2, %cst_3 [0] : vector<16x128xf32> to vector<128xf32>
    %4 = vector.shape_cast %3 : vector<128xf32> to vector<1x128xf32>
    %5 = arith.mulf %2, %2 : vector<16x128xf32>
    %cst_4 = arith.constant dense<0.000000e+00> : vector<128xf32>
    %6 = vector.multi_reduction <add>, %5, %cst_4 [0] : vector<16x128xf32> to vector<128xf32>
    %7 = vector.shape_cast %6 : vector<128xf32> to vector<1x128xf32>
    %cst_5 = arith.constant 6.250000e-02 : f32
    %8 = vector.broadcast %cst_5 : f32 to vector<1x128xf32>
    %9 = arith.mulf %4, %8 : vector<1x128xf32>
    %cst_6 = arith.constant 6.250000e-02 : f32
    %10 = vector.broadcast %cst_6 : f32 to vector<1x128xf32>
    %11 = arith.mulf %7, %10 : vector<1x128xf32>
    %12 = arith.mulf %9, %9 : vector<1x128xf32>
    %13 = arith.subf %11, %12 : vector<1x128xf32>
    %c0_7 = arith.constant 0 : index
    %c0_8 = arith.constant 0 : index
    %14 = vector.load %arg2[%c0_7, %c0_8] : memref<1x128xf32, #tpu.memory_space<vmem>>, vector<1x128xf32>
    %cst_9 = arith.constant 9.99999974E-6 : f32
    %15 = vector.broadcast %cst_9 : f32 to vector<1x128xf32>
    %16 = arith.addf %13, %15 : vector<1x128xf32>
    %17 = math.rsqrt %16 : vector<1x128xf32>
    %18 = arith.mulf %14, %17 : vector<1x128xf32>
    %c0_10 = arith.constant 0 : index
    %c0_11 = arith.constant 0 : index
    %19 = vector.load %arg3[%c0_10, %c0_11] : memref<1x128xf32, #tpu.memory_space<vmem>>, vector<1x128xf32>
    %20 = arith.mulf %9, %18 : vector<1x128xf32>
    %21 = arith.subf %19, %20 : vector<1x128xf32>
    %22 = vector.broadcast %18 : vector<1x128xf32> to vector<16x128xf32>
    %23 = arith.mulf %2, %22 : vector<16x128xf32>
    %24 = vector.broadcast %21 : vector<1x128xf32> to vector<16x128xf32>
    %25 = arith.addf %23, %24 : vector<16x128xf32>
    %cst_12 = arith.constant 0.000000e+00 : f32
    %26 = vector.broadcast %cst_12 : f32 to vector<16x128xf32>
    %27 = arith.maximumf %25, %26 : vector<16x128xf32>
    %28 = arith.truncf %27 : vector<16x128xf32> to vector<16x128xbf16>
    %c0_13 = arith.constant 0 : index
    %c0_14 = arith.constant 0 : index
    %29 = vector.load %arg4[%c0_13, %c0_14] : memref<128x128xbf16, #tpu.memory_space<vmem>>, vector<128x128xbf16>
    %cst_15 = arith.constant dense<0.000000e+00> : vector<16x128xf32>
    %30 = tpu.matmul %28, %29, %cst_15 {dimension_numbers = #tpu.dot_dimension_numbers<[1], [0], [0], [1], [0, 0, 1, 1], [], []>} : vector<16x128xbf16>, vector<128x128xbf16>, vector<16x128xf32> -> vector<16x128xf32>
    %cst_16 = arith.constant dense<0.000000e+00> : vector<128xf32>
    %31 = vector.multi_reduction <add>, %30, %cst_16 [0] : vector<16x128xf32> to vector<128xf32>
    %32 = vector.shape_cast %31 : vector<128xf32> to vector<1x128xf32>
    %33 = arith.mulf %30, %30 : vector<16x128xf32>
    %cst_17 = arith.constant dense<0.000000e+00> : vector<128xf32>
    %34 = vector.multi_reduction <add>, %33, %cst_17 [0] : vector<16x128xf32> to vector<128xf32>
    %35 = vector.shape_cast %34 : vector<128xf32> to vector<1x128xf32>
    %cst_18 = arith.constant 6.250000e-02 : f32
    %36 = vector.broadcast %cst_18 : f32 to vector<1x128xf32>
    %37 = arith.mulf %32, %36 : vector<1x128xf32>
    %cst_19 = arith.constant 6.250000e-02 : f32
    %38 = vector.broadcast %cst_19 : f32 to vector<1x128xf32>
    %39 = arith.mulf %35, %38 : vector<1x128xf32>
    %40 = arith.mulf %37, %37 : vector<1x128xf32>
    %41 = arith.subf %39, %40 : vector<1x128xf32>
    %c0_20 = arith.constant 0 : index
    %c0_21 = arith.constant 0 : index
    %42 = vector.load %arg5[%c0_20, %c0_21] : memref<1x128xf32, #tpu.memory_space<vmem>>, vector<1x128xf32>
    %cst_22 = arith.constant 9.99999974E-6 : f32
    %43 = vector.broadcast %cst_22 : f32 to vector<1x128xf32>
    %44 = arith.addf %41, %43 : vector<1x128xf32>
    %45 = math.rsqrt %44 : vector<1x128xf32>
    %46 = arith.mulf %42, %45 : vector<1x128xf32>
    %c0_23 = arith.constant 0 : index
    %c0_24 = arith.constant 0 : index
    %47 = vector.load %arg6[%c0_23, %c0_24] : memref<1x128xf32, #tpu.memory_space<vmem>>, vector<1x128xf32>
    %48 = arith.mulf %37, %46 : vector<1x128xf32>
    %49 = arith.subf %47, %48 : vector<1x128xf32>
    %50 = vector.broadcast %46 : vector<1x128xf32> to vector<16x128xf32>
    %51 = arith.mulf %30, %50 : vector<16x128xf32>
    %52 = vector.broadcast %49 : vector<1x128xf32> to vector<16x128xf32>
    %53 = arith.addf %51, %52 : vector<16x128xf32>
    %cst_25 = arith.constant 0.000000e+00 : f32
    %54 = vector.broadcast %cst_25 : f32 to vector<16x128xf32>
    %55 = arith.maximumf %53, %54 : vector<16x128xf32>
    %56 = arith.truncf %55 : vector<16x128xf32> to vector<16x128xbf16>
    %c0_26 = arith.constant 0 : index
    %c0_27 = arith.constant 0 : index
    %57 = vector.load %arg7[%c0_26, %c0_27] : memref<128x128xbf16, #tpu.memory_space<vmem>>, vector<128x128xbf16>
    %cst_28 = arith.constant dense<0.000000e+00> : vector<16x128xf32>
    %58 = tpu.matmul %56, %57, %cst_28 {dimension_numbers = #tpu.dot_dimension_numbers<[1], [0], [0], [1], [0, 0, 1, 1], [], []>} : vector<16x128xbf16>, vector<128x128xbf16>, vector<16x128xf32> -> vector<16x128xf32>
    %c0_29 = arith.constant 0 : index
    %c0_30 = arith.constant 0 : index
    %59 = vector.load %arg8[%c0_29, %c0_30] : memref<1x128xf32, #tpu.memory_space<vmem>>, vector<1x128xf32>
    %60 = vector.broadcast %59 : vector<1x128xf32> to vector<16x128xf32>
    %61 = arith.addf %58, %60 : vector<16x128xf32>
    %c0_31 = arith.constant 0 : index
    %c0_32 = arith.constant 0 : index
    %62 = vector.load %arg9[%c0_31, %c0_32] : memref<16x128xf32, #tpu.memory_space<vmem>>, vector<16x128xf32>
    tpu.vector_store %arg9[%c0_31, %c0_32], %61 {strides = array<i32>} : memref<16x128xf32, #tpu.memory_space<vmem>>, vector<16x128xf32>,
    return
  }
}

</mosaic_0001>

<llo_original>
// kernel: tpu_custom_call.1
$region0: #{tpu_custom_call.1}
  #allocation0 [shape = 'u32[]', space=smem, size = 0x4, offset = 0x4, fixed_abs, tag = 'smem constant byte address 0x4 - core index']
  #allocation1 [shape = 'u32[72,128]{1,0:T(1,128)}', space=vmem, size = 0x9000, scoped, tag = 'internal scratch']
  %s0 = inlined_call_operand.hbm [shape: bf16[16,128], index: 0, kind: input, shape index: {}]
  %s1 = inlined_call_operand.hbm [shape: bf16[128,128], index: 1, kind: input, shape index: {}]
  %s2 = inlined_call_operand.vmem [shape: f32[1,128], index: 2, kind: input, shape index: {}]
  %s3 = inlined_call_operand.vmem [shape: f32[1,128], index: 3, kind: input, shape index: {}]
  %s4 = inlined_call_operand.hbm [shape: bf16[128,128], index: 4, kind: input, shape index: {}]
  %s5 = inlined_call_operand.vmem [shape: f32[1,128], index: 5, kind: input, shape index: {}]
  %s6 = inlined_call_operand.vmem [shape: f32[1,128], index: 6, kind: input, shape index: {}]
  %s7 = inlined_call_operand.hbm [shape: bf16[128,128], index: 7, kind: input, shape index: {}]
  %s8 = inlined_call_operand.vmem [shape: f32[1,128], index: 8, kind: input, shape index: {}]
  %s9 = inlined_call_operand.hbm [shape: f32[16,128], index: 9, kind: output, shape index: {}]
  %s10 = sld [smem:[#allocation0]]
  $region62: #{tpu_custom_call.1} parent=0
    _
  %s12 = ssub.s32 1, %s10
  %s13 = scalar_select 0, %s12, %s10
  $region1: #{tpu_custom_call.1} parent=0
    #allocation2 [shape = 'u8[4096]{0}', space=vmem, size = 0x1000, scoped, tag = 'input window, operand 0, single buffered']
    #allocation3 [shape = 's32[1]{0}', space=sflag, size = 0x4, scoped, tag = 'scoped memory for tpu_custom_call.1']
    #allocation4 [shape = 's32[1]{0}', space=sflag, size = 0x4, scoped, tag = 'scoped memory for tpu_custom_call.1']
    #allocation5 [shape = 'u8[32768]{0}', space=vmem, size = 0x8000, scoped, tag = 'input window, operand 1, single buffered']
    #allocation6 [shape = 's32[1]{0}', space=sflag, size = 0x4, scoped, tag = 'scoped memory for tpu_custom_call.1']
    #allocation7 [shape = 'u8[32768]{0}', space=vmem, size = 0x8000, scoped, tag = 'input window, operand 4, single buffered']
    #allocation8 [shape = 'u8[32768]{0}', space=vmem, size = 0x8000, scoped, tag = 'input window, operand 7, single buffered']
    #allocation9 [shape = 's32[1]{0}', space=sflag, size = 0x4, scoped, tag = 'scoped memory for tpu_custom_call.1']
    #allocation10 [shape = 'u8[8192]{0}', space=vmem, size = 0x2000, scoped, tag = 'output window, operand 0, single buffered']
    %14 = vsyncpa [#allocation3], 0
    %15 = vsyncpa [#allocation6], 0
    %16 = vsyncpa [#allocation9], 0
    %17 = vsyncpa [#allocation4], 0
    // Predicated region
    $region2: #{tpu_custom_call.1} parent=1 // pred_check
      _
    $region3: #{tpu_custom_call.1} parent=1 // pred_check_branch
      %19 = sbr.rel (0) target = $region5
    $region4: #{tpu_custom_call.1} parent=1 // pred_region
      %21 = vsyncadd [#allocation3], 0
      %s22 = sshll.u32 %s0, 4
      %s23 = int_to_ptr.hbm [resolvable:$true] %s22
      %s24 = sshll.u32 [#allocation2], 4
      %s25 = int_to_ptr.vmem [resolvable:$true] %s24
      %30 = dma.hbm_to_vmem [thread:$0]  %s23, 128, %s25, [#allocation3], 64, 64, 4
    $region5: #{tpu_custom_call.1} parent=1 // pred_fallthru
      _
    // Predicated region
    $region6: #{tpu_custom_call.1} parent=1 // pred_check
      _
    $region7: #{tpu_custom_call.1} parent=1 // pred_check_branch
      %32 = sbr.rel (0) target = $region9
    $region8: #{tpu_custom_call.1} parent=1 // pred_region
      %34 = vsyncadd [#allocation6], 0
      %s35 = sshll.u32 %s1, 4
      %s36 = int_to_ptr.hbm [resolvable:$true] %s35
      %s37 = sshll.u32 [#allocation5], 4
      %s38 = int_to_ptr.vmem [resolvable:$true] %s37
      %43 = dma.hbm_to_vmem [thread:$0]  %s36, 1024, %s38, [#allocation6], 64, 64, 4
    $region9: #{tpu_custom_call.1} parent=1 // pred_fallthru
      _
    // Predicated region
    $region10: #{tpu_custom_call.1} parent=1 // pred_check
      _
    $region11: #{tpu_custom_call.1} parent=1 // pred_check_branch
      %45 = sbr.rel (0) target = $region13
    $region12: #{tpu_custom_call.1} parent=1 // pred_region
      _
    $region13: #{tpu_custom_call.1} parent=1 // pred_fallthru
      _
    // Predicated region
    $region14: #{tpu_custom_call.1} parent=1 // pred_check
      _
    $region15: #{tpu_custom_call.1} parent=1 // pred_check_branch
      %47 = sbr.rel (0) target = $region17
    $region16: #{tpu_custom_call.1} parent=1 // pred_region
      _
    $region17: #{tpu_custom_call.1} parent=1 // pred_fallthru
      _
    // Predicated region
    $region18: #{tpu_custom_call.1} parent=1 // pred_check
      _
    $region19: #{tpu_custom_call.1} parent=1 // pred_check_branch
      %49 = sbr.rel (0) target = $region21
    $region20: #{tpu_custom_call.1} parent=1 // pred_region
      %51 = vsyncadd [#allocation6], 0
      %s52 = sshll.u32 %s4, 4
      %s53 = int_to_ptr.hbm [resolvable:$true] %s52
      %s54 = sshll.u32 [#allocation7], 4
      %s55 = int_to_ptr.vmem [resolvable:$true] %s54
      %60 = dma.hbm_to_vmem [thread:$0]  %s53, 1024, %s55, [#allocation6], 64, 64, 4
    $region21: #{tpu_custom_call.1} parent=1 // pred_fallthru
      _
    // Predicated region
    $region22: #{tpu_custom_call.1} parent=1 // pred_check
      _
    $region23: #{tpu_custom_call.1} parent=1 // pred_check_branch
      %62 = sbr.rel (0) target = $region25
    $region24: #{tpu_custom_call.1} parent=1 // pred_region
      _
    $region25: #{tpu_custom_call.1} parent=1 // pred_fallthru
      _
    // Predicated region
    $region26: #{tpu_custom_call.1} parent=1 // pred_check
      _
    $region27: #{tpu_custom_call.1} parent=1 // pred_check_branch
      %64 = sbr.rel (0) target = $region29
    $region28: #{tpu_custom_call.1} parent=1 // pred_region
      _
    $region29: #{tpu_custom_call.1} parent=1 // pred_fallthru
      _
    // Predicated region
    $region30: #{tpu_custom_call.1} parent=1 // pred_check
      _
    $region31: #{tpu_custom_call.1} parent=1 // pred_check_branch
      %66 = sbr.rel (0) target = $region33
    $region32: #{tpu_custom_call.1} parent=1 // pred_region
      %68 = vsyncadd [#allocation9], 0
      %s69 = sshll.u32 %s7, 4
      %s70 = int_to_ptr.hbm [resolvable:$true] %s69
      %s71 = sshll.u32 [#allocation8], 4
      %s72 = int_to_ptr.vmem [resolvable:$true] %s71
      %77 = dma.hbm_to_vmem [thread:$0]  %s70, 1024, %s72, [#allocation9], 64, 64, 4
    $region33: #{tpu_custom_call.1} parent=1 // pred_fallthru
      _
    // Predicated region
    $region34: #{tpu_custom_call.1} parent=1 // pred_check
      _
    $region35: #{tpu_custom_call.1} parent=1 // pred_check_branch
      %79 = sbr.rel (0) target = $region37
    $region36: #{tpu_custom_call.1} parent=1 // pred_region
      _
    $region37: #{tpu_custom_call.1} parent=1 // pred_fallthru
      _
    // Predicated region
    $region38: #{tpu_custom_call.1} parent=1 // pred_check
      _
    $region39: #{tpu_custom_call.1} parent=1 // pred_check_branch
      %81 = sbr.rel (0) target = $region41
    $region40: #{tpu_custom_call.1} parent=1 // pred_region
      %83 = dma.done [#allocation3], 128
    $region41: #{tpu_custom_call.1} parent=1 // pred_fallthru
      _
    // Predicated region
    $region42: #{tpu_custom_call.1} parent=1 // pred_check
      _
    $region43: #{tpu_custom_call.1} parent=1 // pred_check_branch
      %85 = sbr.rel (0) target = $region45
    $region44: #{tpu_custom_call.1} parent=1 // pred_region
      %87 = dma.done [#allocation6], 1024
    $region45: #{tpu_custom_call.1} parent=1 // pred_fallthru
      _
    // Predicated region
    $region46: #{tpu_custom_call.1} parent=1 // pred_check
      _
    $region47: #{tpu_custom_call.1} parent=1 // pred_check_branch
      %89 = sbr.rel (0) target = $region49
    $region48: #{tpu_custom_call.1} parent=1 // pred_region
      %91 = dma.done [#allocation6], 1024
    $region49: #{tpu_custom_call.1} parent=1 // pred_fallthru
      _
    // Predicated region
    $region50: #{tpu_custom_call.1} parent=1 // pred_check
      _
    $region51: #{tpu_custom_call.1} parent=1 // pred_check_branch
      %93 = sbr.rel (0) target = $region53
    $region52: #{tpu_custom_call.1} parent=1 // pred_region
      %95 = dma.done [#allocation9], 1024
    $region53: #{tpu_custom_call.1} parent=1 // pred_fallthru
      _
    %v96 = vld [vmem:[#allocation2] sm:$0xf]
    %v97 = vld [vmem:[#allocation2 + $0x4] sm:$0xf]
    %v98 = vld [vmem:[#allocation5] sm:$0xf]
    %v99 = vld [vmem:[#allocation5 + $0x4] sm:$0xf]
    %v100 = vld [vmem:[#allocation5 + $0x8] sm:$0xf]
    %v101 = vld [vmem:[#allocation5 + $0xc] sm:$0xf]
    %v102 = vld [vmem:[#allocation5 + $0x10] sm:$0xf]
    %v103 = vld [vmem:[#allocation5 + $0x14] sm:$0xf]
    %v104 = vld [vmem:[#allocation5 + $0x18] sm:$0xf]
    %v105 = vld [vmem:[#allocation5 + $0x1c] sm:$0xf]
    %v106 = vld [vmem:[#allocation5 + $0x20] sm:$0xf]
    %v107 = vld [vmem:[#allocation5 + $0x24] sm:$0xf]
    %v108 = vld [vmem:[#allocation5 + $0x28] sm:$0xf]
    %v109 = vld [vmem:[#allocation5 + $0x2c] sm:$0xf]
    %v110 = vld [vmem:[#allocation5 + $0x30] sm:$0xf]
    %v111 = vld [vmem:[#allocation5 + $0x34] sm:$0xf]
    %v112 = vld [vmem:[#allocation5 + $0x38] sm:$0xf]
    %v113 = vld [vmem:[#allocation5 + $0x3c] sm:$0xf]
    %v116 = vunpack.c.l.b16 %v96
    %v117 = vunpack.c.l.b16 %v97
    %v118 = vpack.c.b16 %v117, %v116
    %v136 = vunpack.c.l.b16 %v98
    %v137 = vunpack.c.l.b16 %v99
    %v138 = vunpack.c.l.b16 %v100
    %v139 = vunpack.c.l.b16 %v101
    %v140 = vunpack.c.l.b16 %v102
    %v141 = vunpack.c.l.b16 %v103
    %v142 = vunpack.c.l.b16 %v104
    %v143 = vunpack.c.l.b16 %v105
    %v144 = vunpack.c.l.b16 %v106
    %v145 = vunpack.c.l.b16 %v107
    %v146 = vunpack.c.l.b16 %v108
    %v147 = vunpack.c.l.b16 %v109
    %v148 = vunpack.c.l.b16 %v110
    %v149 = vunpack.c.l.b16 %v111
    %v150 = vunpack.c.l.b16 %v112
    %v151 = vunpack.c.l.b16 %v113
    %v152 = vpack.c.b16 %v137, %v136
    %v153 = vpack.c.b16 %v139, %v138
    %v154 = vpack.c.b16 %v141, %v140
    %v155 = vpack.c.b16 %v143, %v142
    %v156 = vpack.c.b16 %v145, %v144
    %v157 = vpack.c.b16 %v147, %v146
    %v158 = vpack.c.b16 %v149, %v148
    %v159 = vpack.c.b16 %v151, %v150
    %168 = vmatpush.bf16.msra.mxu0 %v159
    %169 = vmatpush.bf16.msra.mxu0 %v158
    %170 = vmatpush.bf16.msra.mxu0 %v157
    %171 = vmatpush.bf16.msra.mxu0 %v156
    %172 = vmatpush.bf16.msra.mxu0 %v155
    %173 = vmatpush.bf16.msra.mxu0 %v154
    %174 = vmatpush.bf16.msra.mxu0 %v153
    %175 = vmatpush.bf16.msra.mxu0 %v152
    %176 = vmatmul.bf16.gmra.mxu0 %v118
    %v177 = vpop.f32.mrf.mxu0
    %v178 = vadd.f32 0.0, %v177
    %v179 = vpop.f32.mrf.mxu0
    %v180 = vadd.f32 0.0, %v179
    %181 = vdwg.mxu0
    %v182 = vadd.f32 %v178, %v180
    %v183 = vrot.slane %v182, 4
    %v184 = vadd.f32 %v182, %v183
    %v185 = vrot.slane %v184, 2
    %v186 = vadd.f32 %v184, %v185
    %v187 = vrot.slane %v186, 1
    %v188 = vadd.f32 %v186, %v187
    %v189 = vmul.f32 %v178, %v178
    %v190 = vmul.f32 %v180, %v180
    %v191 = vadd.f32 %v189, %v190
    %v192 = vrot.slane %v191, 4
    %v193 = vadd.f32 %v191, %v192
    %v194 = vrot.slane %v193, 2
    %v195 = vadd.f32 %v193, %v194
    %v196 = vrot.slane %v195, 1
    %v197 = vadd.f32 %v195, %v196
    %v198 = vmul.f32 %v188, 0.0625
    %v199 = vmul.f32 %v197, 0.0625
    %v200 = vmul.f32 %v198, %v198
    %v201 = vsub.f32 %v199, %v200
    %v202 = vld [vmem:[%s2] sm:$0x1]
    %v203 = vadd.f32 %v201, 1e-05
    %v204 = vrsqrt.pop %v203
    %v205 = vmul.f32 %v204, %v203
    %v206 = vmul.f32 %v205, %v204
    %v207 = vmul.f32 0.5, %v206
    %v208 = vsub.f32 1.5, %v207
    %v209 = vmul.f32 %v204, %v208
    %vm210 = vweird.f32 %v203
    %vm211 = vweird.f32 %v204
    %vm212 = vmor %vm210, %vm211
    %v213 = vsel %vm212, %v204, %v209
    %v214 = vmul.f32 %v202, %v213
    %v215 = vld [vmem:[%s3] sm:$0x1]
    %v216 = vmul.f32 %v198, %v214
    %v217 = vsub.f32 %v215, %v216
    %v219 = vperm.slane %v214, 0
    %v221 = vmul.f32 %v178, %v219
    %v222 = vmul.f32 %v180, %v219
    %v224 = vperm.slane %v217, 0
    %v226 = vadd.f32 %v221, %v224
    %v227 = vadd.f32 %v222, %v224
    %v228 = vmax.f32 %v226, 0.0
    %v229 = vmax.f32 %v227, 0.0
    %v230 = vpack.c.bf16 %v229, %v228
    %v231 = vld [vmem:[#allocation7] sm:$0xf]
    %v232 = vld [vmem:[#allocation7 + $0x4] sm:$0xf]
    %v233 = vld [vmem:[#allocation7 + $0x8] sm:$0xf]
    %v234 = vld [vmem:[#allocation7 + $0xc] sm:$0xf]
    %v235 = vld [vmem:[#allocation7 + $0x10] sm:$0xf]
    %v236 = vld [vmem:[#allocation7 + $0x14] sm:$0xf]
    %v237 = vld [vmem:[#allocation7 + $0x18] sm:$0xf]
    %v238 = vld [vmem:[#allocation7 + $0x1c] sm:$0xf]
    %v239 = vld [vmem:[#allocation7 + $0x20] sm:$0xf]
    %v240 = vld [vmem:[#allocation7 + $0x24] sm:$0xf]
    %v241 = vld [vmem:[#allocation7 + $0x28] sm:$0xf]
    %v242 = vld [vmem:[#allocation7 + $0x2c] sm:$0xf]
    %v243 = vld [vmem:[#allocation7 + $0x30] sm:$0xf]
    %v244 = vld [vmem:[#allocation7 + $0x34] sm:$0xf]
    %v245 = vld [vmem:[#allocation7 + $0x38] sm:$0xf]
    %v246 = vld [vmem:[#allocation7 + $0x3c] sm:$0xf]
    %v263 = vunpack.c.l.b16 %v231
    %v264 = vunpack.c.l.b16 %v232
    %v265 = vunpack.c.l.b16 %v233
    %v266 = vunpack.c.l.b16 %v234
    %v267 = vunpack.c.l.b16 %v235
    %v268 = vunpack.c.l.b16 %v236
    %v269 = vunpack.c.l.b16 %v237
    %v270 = vunpack.c.l.b16 %v238
    %v271 = vunpack.c.l.b16 %v239
    %v272 = vunpack.c.l.b16 %v240
    %v273 = vunpack.c.l.b16 %v241
    %v274 = vunpack.c.l.b16 %v242
    %v275 = vunpack.c.l.b16 %v243
    %v276 = vunpack.c.l.b16 %v244
    %v277 = vunpack.c.l.b16 %v245
    %v278 = vunpack.c.l.b16 %v246
    %v279 = vpack.c.b16 %v264, %v263
    %v280 = vpack.c.b16 %v266, %v265
    %v281 = vpack.c.b16 %v268, %v267
    %v282 = vpack.c.b16 %v270, %v269
    %v283 = vpack.c.b16 %v272, %v271
    %v284 = vpack.c.b16 %v274, %v273
    %v285 = vpack.c.b16 %v276, %v275
    %v286 = vpack.c.b16 %v278, %v277
    %295 = vmatpush.bf16.msra.mxu0 %v286
    %296 = vmatpush.bf16.msra.mxu0 %v285
    %297 = vmatpush.bf16.msra.mxu0 %v284
    %298 = vmatpush.bf16.msra.mxu0 %v283
    %299 = vmatpush.bf16.msra.mxu0 %v282
    %300 = vmatpush.bf16.msra.mxu0 %v281
    %301 = vmatpush.bf16.msra.mxu0 %v280
    %302 = vmatpush.bf16.msra.mxu0 %v279
    %303 = vmatmul.bf16.gmra.mxu0 %v230
    %v304 = vpop.f32.mrf.mxu0
    %v305 = vadd.f32 0.0, %v304
    %v306 = vpop.f32.mrf.mxu0
    %v307 = vadd.f32 0.0, %v306
    %308 = vdwg.mxu0
    %v309 = vadd.f32 %v305, %v307
    %v310 = vrot.slane %v309, 4
    %v311 = vadd.f32 %v309, %v310
    %v312 = vrot.slane %v311, 2
    %v313 = vadd.f32 %v311, %v312
    %v314 = vrot.slane %v313, 1
    %v315 = vadd.f32 %v313, %v314
    %v316 = vmul.f32 %v305, %v305
    %v317 = vmul.f32 %v307, %v307
    %v318 = vadd.f32 %v316, %v317
    %v319 = vrot.slane %v318, 4
    %v320 = vadd.f32 %v318, %v319
    %v321 = vrot.slane %v320, 2
    %v322 = vadd.f32 %v320, %v321
    %v323 = vrot.slane %v322, 1
    %v324 = vadd.f32 %v322, %v323
    %v325 = vmul.f32 %v315, 0.0625
    %v326 = vmul.f32 %v324, 0.0625
    %v327 = vmul.f32 %v325, %v325
    %v328 = vsub.f32 %v326, %v327
    %v329 = vld [vmem:[%s5] sm:$0x1]
    %v330 = vadd.f32 %v328, 1e-05
    %v331 = vrsqrt.pop %v330
    %v332 = vmul.f32 %v331, %v330
    %v333 = vmul.f32 %v332, %v331
    %v334 = vmul.f32 0.5, %v333
    %v335 = vsub.f32 1.5, %v334
    %v336 = vmul.f32 %v331, %v335
    %vm337 = vweird.f32 %v330
    %vm338 = vweird.f32 %v331
    %vm339 = vmor %vm337, %vm338
    %v340 = vsel %vm339, %v331, %v336
    %v341 = vmul.f32 %v329, %v340
    %v342 = vld [vmem:[%s6] sm:$0x1]
    %v343 = vmul.f32 %v325, %v341
    %v344 = vsub.f32 %v342, %v343
    %v346 = vperm.slane %v341, 0
    %v348 = vmul.f32 %v305, %v346
    %v349 = vmul.f32 %v307, %v346
    %v351 = vperm.slane %v344, 0
    %v353 = vadd.f32 %v348, %v351
    %v354 = vadd.f32 %v349, %v351
    %v355 = vmax.f32 %v353, 0.0
    %v356 = vmax.f32 %v354, 0.0
    %v357 = vpack.c.bf16 %v356, %v355
    %v358 = vld [vmem:[#allocation8] sm:$0xf]
    %v359 = vld [vmem:[#allocation8 + $0x4] sm:$0xf]
    %v360 = vld [vmem:[#allocation8 + $0x8] sm:$0xf]
    %v361 = vld [vmem:[#allocation8 + $0xc] sm:$0xf]
    %v362 = vld [vmem:[#allocation8 + $0x10] sm:$0xf]
    %v363 = vld [vmem:[#allocation8 + $0x14] sm:$0xf]
    %v364 = vld [vmem:[#allocation8 + $0x18] sm:$0xf]
    %v365 = vld [vmem:[#allocation8 + $0x1c] sm:$0xf]
    %v366 = vld [vmem:[#allocation8 + $0x20] sm:$0xf]
    %v367 = vld [vmem:[#allocation8 + $0x24] sm:$0xf]
    %v368 = vld [vmem:[#allocation8 + $0x28] sm:$0xf]
    %v369 = vld [vmem:[#allocation8 + $0x2c] sm:$0xf]
    %v370 = vld [vmem:[#allocation8 + $0x30] sm:$0xf]
    %v371 = vld [vmem:[#allocation8 + $0x34] sm:$0xf]
    %v372 = vld [vmem:[#allocation8 + $0x38] sm:$0xf]
    %v373 = vld [vmem:[#allocation8 + $0x3c] sm:$0xf]
    %v374 = vld [vmem:[%s8] sm:$0x1]
    %v376 = vperm.slane %v374, 0
    %v394 = vunpack.c.l.b16 %v358
    %v395 = vunpack.c.l.b16 %v359
    %v396 = vunpack.c.l.b16 %v360
    %v397 = vunpack.c.l.b16 %v361
    %v398 = vunpack.c.l.b16 %v362
    %v399 = vunpack.c.l.b16 %v363
    %v400 = vunpack.c.l.b16 %v364
    %v401 = vunpack.c.l.b16 %v365
    %v402 = vunpack.c.l.b16 %v366
    %v403 = vunpack.c.l.b16 %v367
    %v404 = vunpack.c.l.b16 %v368
    %v405 = vunpack.c.l.b16 %v369
    %v406 = vunpack.c.l.b16 %v370
    %v407 = vunpack.c.l.b16 %v371
    %v408 = vunpack.c.l.b16 %v372
    %v409 = vunpack.c.l.b16 %v373
    %v410 = vpack.c.b16 %v395, %v394
    %v411 = vpack.c.b16 %v397, %v396
    %v412 = vpack.c.b16 %v399, %v398
    %v413 = vpack.c.b16 %v401, %v400
    %v414 = vpack.c.b16 %v403, %v402
    %v415 = vpack.c.b16 %v405, %v404
    %v416 = vpack.c.b16 %v407, %v406
    %v417 = vpack.c.b16 %v409, %v408
    %426 = vmatpush.bf16.msra.mxu0 %v417
    %427 = vmatpush.bf16.msra.mxu0 %v416
    %428 = vmatpush.bf16.msra.mxu0 %v415
    %429 = vmatpush.bf16.msra.mxu0 %v414
    %430 = vmatpush.bf16.msra.mxu0 %v413
    %431 = vmatpush.bf16.msra.mxu0 %v412
    %432 = vmatpush.bf16.msra.mxu0 %v411
    %433 = vmatpush.bf16.msra.mxu0 %v410
    %434 = vmatmul.bf16.gmra.mxu0 %v357
    %v435 = vpop.f32.mrf.mxu0
    %v436 = vadd.f32 %v376, %v435
    %v437 = vpop.f32.mrf.mxu0
    %v438 = vadd.f32 %v376, %v437
    %439 = vdwg.mxu0
    %440 = vst [vmem:[#allocation10] sm:$0xff] %v436
    %441 = vst [vmem:[#allocation10 + $0x8] sm:$0xff] %v438
    // Predicated region
    $region54: #{tpu_custom_call.1} parent=1 // pred_check
      _
    $region55: #{tpu_custom_call.1} parent=1 // pred_check_branch
      %443 = sbr.rel (0) target = $region57
    $region56: #{tpu_custom_call.1} parent=1 // pred_region
      %445 = vsyncadd [#allocation4], 0
      %s446 = sshll.u32 [#allocation10], 4
      %s447 = int_to_ptr.vmem [resolvable:$true] %s446
      %s448 = sshll.u32 %s9, 4
      %s449 = int_to_ptr.hbm [resolvable:$true] %s448
      %454 = dma.vmem_to_hbm [thread:$0]  %s447, 256, %s449, [#allocation4], 128, 128, 8
    $region57: #{tpu_custom_call.1} parent=1 // pred_fallthru
      _
    // Predicated region
    $region58: #{tpu_custom_call.1} parent=1 // pred_check
      _
    $region59: #{tpu_custom_call.1} parent=1 // pred_check_branch
      %456 = sbr.rel (0) target = $region61
    $region60: #{tpu_custom_call.1} parent=1 // pred_region
      %458 = dma.done [#allocation4], 256
    $region61: #{tpu_custom_call.1} parent=1 // pred_fallthru
      _
    %459 = vsyncpa [#allocation3], 1
    %460 = vsyncpa [#allocation6], 1
    %461 = vsyncpa [#allocation9], 1
    %462 = vsyncpa [#allocation4], 1

</llo_original>
